<compile_context>
chip_gen: v7x
topology: tpu7x:2x2x1
jax: 0.10.0
libtpu: 0.0.40
codegen_flags: <defaults>
</compile_context>

<pallas_src>
from math import ceil, pi

import jax
import jax.numpy as jnp
import numpy as np
from jax.experimental import pallas as pl
from jax.experimental.pallas import tpu as pltpu

POS_EMBED_FREQ_INV = 2000.0


def _cdiv(a: int, b: int) -> int:
    return -(-a // b)


def _round_up(a: int, b: int) -> int:
    return _cdiv(a, b) * b


def make_inv_freq(channels: int) -> jnp.ndarray:
    c = int(ceil(channels / 2) * 2)
    k = jnp.arange(0, c, 2, dtype=jnp.float32)
    return 1.0 / (POS_EMBED_FREQ_INV ** (k / c))          # (c // 2,)


def _sincos_kernel(x_ref, const_ref, o_ref):
    # x_ref:     (RT, k)      f32 positions, k packed per output row
    # const_ref: (k + 2, LW)  rows [0:k] one-hot lane expander, [k] freq, [k+1] phase
    # o_ref:     (RT, LW)     LW = k * C lanes (== 128 when packed)
    k = x_ref.shape[-1]
    freq = const_ref[k:k + 1, :]          # (1, LW)
    phase = const_ref[k + 1:k + 2, :]     # (1, LW)
    if k == 1:
        pos = x_ref[...]                  # (RT, 1): lane-broadcasts against (1, LW)
    else:
        # Expand each position across its C-lane group on the (idle) MXU:
        # pos[r, lane] = x[r, lane // C].
        pos = jnp.dot(x_ref[...], const_ref[0:k, :],
                      preferred_element_type=jnp.float32)  # (RT, LW)
    # cos(a) == sin(a + pi/2): a single VPU transcendental per element,
    # stored as one full-width lane-dense vreg store.
    o_ref[...] = jnp.sin(pos * freq + phase).astype(o_ref.dtype)


def sinusoidal_positional_encoding(x, channels: int, *,
                                   out_dtype=jnp.float32,
                                   target_out_tile_bytes: int = 4 * 1024 * 1024):
    """x: (..., N) float positions -> (..., N, 2*ceil(channels/2)) embedding."""
    x = jnp.asarray(x, jnp.float32)
    orig_shape = x.shape
    m = int(np.prod(orig_shape)) if len(orig_shape) else 1

    half = int(ceil(channels / 2))
    c = 2 * half

    # Lane packing: k positions per 128-lane output row when C < 128.
    k = 128 // c if (c < 128 and 128 % c == 0) else 1
    lw = k * c

    # Single tiny constant operand: one-hot lane expander + tiled freq + tiled phase.
    inv_freq = make_inv_freq(channels)                                    # (half,)
    freq_row = jnp.tile(jnp.concatenate([inv_freq, inv_freq]), k)         # (lw,)
    phase_row = jnp.tile(
        jnp.concatenate([jnp.zeros((half,), jnp.float32),
                         jnp.full((half,), pi / 2, jnp.float32)]), k)     # (lw,)
    onehot = (np.arange(lw)[None, :] // c == np.arange(k)[:, None])
    consts = jnp.concatenate(
        [jnp.asarray(onehot, jnp.float32), freq_row[None, :], phase_row[None, :]],
        axis=0)                                                           # (k+2, lw)

    # Row tiling: ~target_out_tile_bytes per output tile. The (RT, k) position
    # block pads to 128 lanes in VMEM, so in-tile ~= out-tile when packed;
    # 2x(in)+2x(out) stays well under the explicit 48 MiB VMEM limit.
    rows = _cdiv(m, k)
    out_row_bytes = _round_up(lw, 128) * 4
    rt_target = max(8, (target_out_tile_bytes // out_row_bytes) // 8 * 8)
    grid_n = max(1, _cdiv(rows, rt_target))
    if grid_n > 1 and grid_n % 2 == 1:
        grid_n += 1                 # even step count -> both v7x TensorCores busy
    rt = _round_up(_cdiv(rows, grid_n), 8)
    rows_padded = rt * grid_n

    flat = x.reshape(-1)
    pad = rows_padded * k - m
    if pad:
        flat = jnp.concatenate([flat, jnp.zeros((pad,), jnp.float32)])
    xp = flat.reshape(rows_padded, k)

    out = pl.pallas_call(
        _sincos_kernel,
        out_shape=jax.ShapeDtypeStruct((rows_padded, lw), out_dtype),
        grid_spec=pltpu.PrefetchScalarGridSpec(
            num_scalar_prefetch=0,
            grid=(grid_n,),
            in_specs=[
                pl.BlockSpec((rt, k), lambda i: (i, 0)),
                pl.BlockSpec((k + 2, lw), lambda i: (0, 0)),   # constant, fetched once
            ],
            out_specs=pl.BlockSpec((rt, lw), lambda i: (i, 0)),
        ),
        compiler_params=pltpu.CompilerParams(
            dimension_semantics=("parallel",),
            vmem_limit_bytes=48 * 1024 * 1024,
        ),
    )(xp, consts)

    emb = out.reshape(rows_padded * k, c)
    if rows_padded * k != m:
        emb = emb[:m]
    return emb.reshape(tuple(orig_shape) + (c,))


def _reference(x, channels):
    inv_freq = make_inv_freq(channels)
    sin_inp = jnp.einsum("...i,j->...ij", jnp.asarray(x, jnp.float32), inv_freq)
    return jnp.concatenate([jnp.sin(sin_inp), jnp.cos(sin_inp)], axis=-1)


if __name__ == "__main__":
    key = jax.random.PRNGKey(0)
    k1, k2, k3, k4 = jax.random.split(key, 4)

    # 1) Small shape consistent with the module (batch of coordinate sequences).
    B, N, CH = 2, 8, 32
    x1 = jax.random.uniform(k1, (B, N), dtype=jnp.float32) * 100.0
    o1 = jax.block_until_ready(sinusoidal_positional_encoding(x1, CH))
    r1 = _reference(x1, CH)
    assert o1.shape == (B, N, CH), o1.shape
    # sin(a + pi/2) vs cos(a) differ by a few ULP of the (large) argument.
    assert jnp.allclose(o1, r1, atol=2e-5, rtol=2e-5)

    # 2) Packed path with C=64 (k = 2 positions per 128-lane output row).
    x2 = jax.random.uniform(k2, (2, 1024), dtype=jnp.float32) * 100.0
    o2 = jax.block_until_ready(sinusoidal_positional_encoding(x2, 64))
    r2 = _reference(x2, 64)
    assert o2.shape == (2, 1024, 64), o2.shape
    assert jnp.allclose(o2, r2, atol=1e-4, rtol=1e-4)

    # 3) Multi-step pipelined grid (tiny tile budget forces several grid steps).
    x3 = jax.random.uniform(k3, (2, 2048), dtype=jnp.float32) * 100.0
    o3 = jax.block_until_ready(
        sinusoidal_positional_encoding(x3, 32, target_out_tile_bytes=64 * 1024))
    r3 = _reference(x3, 32)
    assert o3.shape == (2, 2048, 32), o3.shape
    assert jnp.allclose(o3, r3, atol=1e-4, rtol=1e-4)

    # 4) Odd channel count (rounded to 6) exercises the k=1 fallback path.
    x4 = jax.random.uniform(k4, (2, 16), dtype=jnp.float32) * 10.0
    o4 = jax.block_until_ready(sinusoidal_positional_encoding(x4, 5))
    r4 = _reference(x4, 5)
    assert o4.shape == (2, 16, 6), o4.shape
    assert jnp.allclose(o4, r4, atol=1e-5, rtol=1e-5)

    print("KERNEL_OK")
</pallas_src>

<mosaic_0001>
module attributes {stable_mosaic.version = 11 : i64} {
  func.func @_sincos_kernel(%arg0: i32, %arg1: memref<8x4xf32, #tpu.memory_space<vmem>>, %arg2: memref<6x128xf32, #tpu.memory_space<vmem>>, %arg3: memref<8x128xf32, #tpu.memory_space<vmem>>) attributes {dimension_semantics = [#tpu.dimension_semantics<parallel>], iteration_bounds = array<i64: 1>, scalar_prefetch = 0 : i64, scratch_operands = 0 : i64, tpu.core_type = #tpu.core_type<tc>, window_params = [{transform_indices = @transform_0, window_bounds = array<i64: 8, 4>}, {pipeline_mode = #tpu.pipeline_mode<synchronous>, transform_indices = @transform_1, window_bounds = array<i64: 6, 128>}, {transform_indices = @transform_2, window_bounds = array<i64: 8, 128>}]} {
    %c4 = arith.constant 4 : index
    %c0 = arith.constant 0 : index
    %0 = vector.load %arg2[%c4, %c0] : memref<6x128xf32, #tpu.memory_space<vmem>>, vector<1x128xf32>
    %c5 = arith.constant 5 : index
    %c0_0 = arith.constant 0 : index
    %1 = vector.load %arg2[%c5, %c0_0] : memref<6x128xf32, #tpu.memory_space<vmem>>, vector<1x128xf32>
    %c0_1 = arith.constant 0 : index
    %c0_2 = arith.constant 0 : index
    %2 = vector.load %arg1[%c0_1, %c0_2] : memref<8x4xf32, #tpu.memory_space<vmem>>, vector<8x4xf32>
    %c0_3 = arith.constant 0 : index
    %c0_4 = arith.constant 0 : index
    %3 = vector.load %arg2[%c0_3, %c0_4] : memref<6x128xf32, #tpu.memory_space<vmem>>, vector<4x128xf32>
    %cst = arith.constant dense<0.000000e+00> : vector<8x128xf32>
    %4 = tpu.matmul %2, %3, %cst {dimension_numbers = #tpu.dot_dimension_numbers<[1], [0], [0], [1], [0, 0, 1, 1], [], []>} : vector<8x4xf32>, vector<4x128xf32>, vector<8x128xf32> -> vector<8x128xf32>
    %5 = vector.broadcast %0 : vector<1x128xf32> to vector<8x128xf32>
    %6 = arith.mulf %4, %5 : vector<8x128xf32>
    %7 = vector.broadcast %1 : vector<1x128xf32> to vector<8x128xf32>
    %8 = arith.addf %6, %7 : vector<8x128xf32>
    %9 = math.sin %8 : vector<8x128xf32>
    %c0_5 = arith.constant 0 : index
    %c0_6 = arith.constant 0 : index
    %10 = vector.load %arg3[%c0_5, %c0_6] : memref<8x128xf32, #tpu.memory_space<vmem>>, vector<8x128xf32>
    tpu.vector_store %arg3[%c0_5, %c0_6], %9 {strides = array<i32>} : memref<8x128xf32, #tpu.memory_space<vmem>>, vector<8x128xf32>,
    return
  }
  func.func @transform_0(%arg0: i32) -> (i32, i32) {
    %c0_i32 = arith.constant 0 : i32
    %c0_i32_0 = arith.constant 0 : i32
    return %arg0, %c0_i32 : i32, i32
  }
  func.func @transform_1(%arg0: i32) -> (i32, i32) {
    %c0_i32 = arith.constant 0 : i32
    %c0_i32_0 = arith.constant 0 : i32
    %c0_i32_1 = arith.constant 0 : i32
    return %c0_i32, %c0_i32_0 : i32, i32
  }
  func.func @transform_2(%arg0: i32) -> (i32, i32) {
    %c0_i32 = arith.constant 0 : i32
    %c0_i32_0 = arith.constant 0 : i32
    return %arg0, %c0_i32 : i32, i32
  }
}

</mosaic_0001>

<llo_original>
// kernel: tpu_custom_call.1
$region0: #{tpu_custom_call.1}
  #allocation0 [shape = 'u32[]', space=smem, size = 0x4, offset = 0x4, fixed_abs, tag = 'smem constant byte address 0x4 - core index']
  #allocation1 [shape = 'u32[144,128]{1,0:T(1,128)}', space=vmem, size = 0x12000, scoped, tag = 'internal scratch']
  %s0 = inlined_call_operand.vmem [shape: f32[8,4], index: 0, kind: input, shape index: {}]
  %s1 = inlined_call_operand.vmem [shape: f32[6,128], index: 1, kind: input, shape index: {}]
  %s2 = inlined_call_operand.hbm [shape: f32[8,128], index: 2, kind: output, shape index: {}]
  %s3 = sld [smem:[#allocation0]]
  $region18: #{tpu_custom_call.1} parent=0
    _
  %s5 = ssub.s32 1, %s3
  %s6 = scalar_select 0, %s5, %s3
  $region1: #{tpu_custom_call.1} parent=0
    #allocation2 [shape = 'u8[4096]{0}', space=vmem, size = 0x1000, scoped, tag = 'output window, operand 0, single buffered']
    #allocation3 [shape = 's32[1]{0}', space=sflag, size = 0x4, scoped, tag = 'scoped memory for tpu_custom_call.1']
    %7 = vsyncpa [#allocation3], 0
    // Predicated region
    $region2: #{tpu_custom_call.1} parent=1 // pred_check
      _
    $region3: #{tpu_custom_call.1} parent=1 // pred_check_branch
      %9 = sbr.rel (0) target = $region5
    $region4: #{tpu_custom_call.1} parent=1 // pred_region
      _
    $region5: #{tpu_custom_call.1} parent=1 // pred_fallthru
      _
    // Predicated region
    $region6: #{tpu_custom_call.1} parent=1 // pred_check
      _
    $region7: #{tpu_custom_call.1} parent=1 // pred_check_branch
      %11 = sbr.rel (0) target = $region9
    $region8: #{tpu_custom_call.1} parent=1 // pred_region
      _
    $region9: #{tpu_custom_call.1} parent=1 // pred_fallthru
      _
    %v12 = vld [vmem:[%s1 + $0x4] sm:$0x1]
    %v13 = vld [vmem:[%s1 + $0x5] sm:$0x1]
    %v14 = vld [vmem:[%s0] sm:$0xff]
    %v15 = vld [vmem:[%s1] sm:$0xf]
    %vm16 = vcmask 31744
    %v18 = vsel %vm16, %v14, 0
    %vm20 = vcmask 1043456
    %v22 = vsel %vm20, %v15, 0
    %24 = vmatprep.subr.mxu0 0.0
    %25 = vmatpush1.msra.mxu0 %v22
    %26 = vmatprep.subr.mxu0 0.0
    %27 = vmatpush1.msra.mxu0 0.0
    %28 = vmatprep.subr.mxu0 0.0
    %29 = vmatpush1.msra.mxu0 0.0
    %30 = vmatprep.subr.mxu0 0.0
    %31 = vmatpush1.msra.mxu0 0.0
    %32 = vmatprep.subr.mxu0 0.0
    %33 = vmatpush1.msra.mxu0 0.0
    %34 = vmatprep.subr.mxu0 0.0
    %35 = vmatpush1.msra.mxu0 0.0
    %36 = vmatprep.subr.mxu0 0.0
    %37 = vmatpush1.msra.mxu0 0.0
    %38 = vmatprep.subr.mxu0 0.0
    %39 = vmatpush1.msra.mxu0 0.0
    %40 = vmatprep.subr.mxu0 0.0
    %41 = vmatpush1.msra.mxu0 0.0
    %42 = vmatprep.subr.mxu0 0.0
    %43 = vmatpush1.msra.mxu0 0.0
    %44 = vmatprep.subr.mxu0 0.0
    %45 = vmatpush1.msra.mxu0 0.0
    %46 = vmatprep.subr.mxu0 0.0
    %47 = vmatpush1.msra.mxu0 0.0
    %48 = vmatprep.subr.mxu0 0.0
    %49 = vmatpush1.msra.mxu0 0.0
    %50 = vmatprep.subr.mxu0 0.0
    %51 = vmatpush1.msra.mxu0 0.0
    %52 = vmatprep.subr.mxu0 0.0
    %53 = vmatpush1.msra.mxu0 0.0
    %54 = vmatprep.subr.mxu0 0.0
    %55 = vmatpush1.msra.mxu0 0.0
    %56 = vmatprep.subr.mxu0 0.0
    %57 = vmatpush1.msra.mxu0 0.0
    %58 = vmatprep.subr.mxu0 0.0
    %59 = vmatpush1.msra.mxu0 0.0
    %60 = vmatprep.subr.mxu0 0.0
    %61 = vmatpush1.msra.mxu0 0.0
    %62 = vmatprep.subr.mxu0 0.0
    %63 = vmatpush1.msra.mxu0 0.0
    %64 = vmatprep.subr.mxu0 0.0
    %65 = vmatpush1.msra.mxu0 0.0
    %66 = vmatprep.subr.mxu0 0.0
    %67 = vmatpush1.msra.mxu0 0.0
    %68 = vmatprep.subr.mxu0 0.0
    %69 = vmatpush1.msra.mxu0 0.0
    %70 = vmatprep.subr.mxu0 0.0
    %71 = vmatpush1.msra.mxu0 0.0
    %72 = vmatprep.subr.mxu0 0.0
    %73 = vmatpush1.msra.mxu0 0.0
    %74 = vmatprep.subr.mxu0 0.0
    %75 = vmatpush1.msra.mxu0 0.0
    %76 = vmatprep.subr.mxu0 0.0
    %77 = vmatpush1.msra.mxu0 0.0
    %78 = vmatprep.subr.mxu0 0.0
    %79 = vmatpush1.msra.mxu0 0.0
    %80 = vmatprep.subr.mxu0 0.0
    %81 = vmatpush1.msra.mxu0 0.0
    %82 = vmatprep.subr.mxu0 0.0
    %83 = vmatpush1.msra.mxu0 0.0
    %84 = vmatprep.subr.mxu0 0.0
    %85 = vmatpush1.msra.mxu0 0.0
    %86 = vmatprep.subr.mxu0 0.0
    %87 = vmatpush1.msra.mxu0 0.0
    %88 = vmatprep.mubr.f32.mxu0 0.0
    %89 = vmatmul.mubr.f32.gmra.mrb[0].mxu0 %v18
    %v90 = vpop.f32.mrb[0].mxu0
    %v91 = vadd.f32 0.0, %v90
    %v92 = vpop.f32.mrb[0].mxu0
    %93 = vdwg.mxu0
    %v94 = vlaneseq
    %v95 = vshrl.u32 %v94, 7
    %v96 = vsub.s32 0, %v95
    %v97 = vrot.slane %v12, %v96
    %v98 = vmul.f32 %v91, %v97
    %v99 = vlaneseq
    %v100 = vshrl.u32 %v99, 7
    %v101 = vsub.s32 0, %v100
    %v102 = vrot.slane %v13, %v101
    %v103 = vadd.f32 %v98, %v102
    %v104 = vand.u32 2147483647, %v103
    %vm105 = vcmp.le.f32.partialorder %v104, 0.7853982
    %vm106 = vcmp.lt.s32.totalorder %v103, 0
    %v107 = vand.u32 %v103, 2139095040
    %v108 = vshrl.u32 %v107, 23
    %v109 = vsub.s32 %v108, 127
    %v110 = vand.u32 2147483647, %v103
    %v111 = vand.u32 %v110, 8388607
    %v112 = vor.u32 %v111, 8388608
    %v113 = vsub.s32 0, %v112
    %v114 = vadd.s32 %v109, 1
    %vm115 = vcmp.gt.s32.totalorder %v114, 0
    %v116 = vsel %vm115, %v114, 0
    %v117 = vshrl.u32 %v116, 5
    %v118 = vand.u32 %v116, 31
    %v119 = vsub.s32 32, %v118
    %v120 = vshrl.u32 683565275, %v119
    %v121 = vshll.u32 683565275, %v118
    %v122 = vshrl.u32 2475754826, %v119
    %v123 = vor.u32 %v121, %v122
    %v124 = vshll.u32 2475754826, %v118
    %v125 = vshrl.u32 2131351028, %v119
    %v126 = vor.u32 %v124, %v125
    %v127 = vshll.u32 2131351028, %v118
    %v128 = vshrl.u32 2102212464, %v119
    %v129 = vor.u32 %v127, %v128
    %v130 = vshll.u32 2102212464, %v118
    %v131 = vshrl.u32 920167782, %v119
    %v132 = vor.u32 %v130, %v131
    %v133 = vshll.u32 920167782, %v118
    %v134 = vshrl.u32 1326507024, %v119
    %v135 = vor.u32 %v133, %v134
    %vm136 = vcmp.lt.s32.totalorder %v117, 1
    %vm137 = vcmp.lt.s32.totalorder %v117, 2
    %vm138 = vcmp.lt.s32.totalorder %v117, 3
    %vm139 = vcmp.lt.s32.totalorder %v117, 4
    %v140 = vsel %vm136, %v120, %v123
    %v141 = vsel %vm139, %v129, 2102212464
    %v142 = vsel %vm138, %v126, %v141
    %v143 = vsel %vm137, %v140, %v142
    %v144 = vsel %vm136, %v123, %v126
    %v145 = vsel %vm139, %v132, 920167782
    %v146 = vsel %vm138, %v129, %v145
    %v147 = vsel %vm137, %v144, %v146
    %v148 = vsel %vm136, %v126, %v129
    %v149 = vsel %vm139, %v135, 1326507024
    %v150 = vsel %vm138, %v132, %v149
    %v151 = vsel %vm137, %v148, %v150
    %v152 = vshll.u32 %v112, 8
    %v153 = vmul.u32.u64.compose %v152, %v151
    %v154 = vextract.low.u32 %v153
    %v155 = vextract.high.u32 %v153
    %v156 = vmul.u32.u64.compose %v152, %v147
    %v157 = vextract.low.u32 %v156
    %v158 = vextract.high.u32 %v156
    %v159 = vmul.u32 %v152, %v143
    %v160 = vadd.s32 %v155, %v157
    %vm161 = vc.u32 %v155, %v157
    %v162 = vadd.s32 %v158, 1
    %v163 = vsel %vm161, %v162, %v158
    %v164 = vadd.s32 %v159, %v163
    %v165 = vadd.s32 %v164, 536870912
    %v166 = vshrl.u32 %v165, 30
    %v167 = vshll.u32 %v166, 30
    %v168 = vsub.s32 %v164, %v167
    %vm169 = vcmp.lt.s32.totalorder %v168, 0
    %v170 = vsub.s32 0, %v168
    %v171 = vsel %vm169, %v170, %v168
    %v172 = vclz %v171
    %v173 = vsub.s32 %v172, 2
    %vm174 = vcmp.gt.s32.totalorder 0, %v173
    %v175 = vsel %vm174, 0, %v173
    %v176 = vsub.s32 32, %v175
    %v177 = vshll.u32 %v168, %v175
    %v178 = vshrl.u32 %v160, %v176
    %v179 = vor.u32 %v177, %v178
    %v180 = vsub.s32 4294967266, %v175
    %v181 = vadd.s32 %v180, 127
    %v182 = vshll.u32 %v181, 23
    %v183 = vor.u32 4788187, %v182
    %v184 = vand.u32 2147483647, %v183
    %v186 = vcvt.s32.f32 %v179
    %v187 = vmul.f32 %v186, %v184
    %v188 = vxor.u32 %v187, 2147483648
    %v189 = vsel %vm106, %v188, %v187
    %v190 = vsub.s32 4, %v166
    %v191 = vsel %vm106, %v190, %v166
    %v192 = vsel %vm105, %v103, %v189
    %v193 = vsel %vm105, 0, %v191
    %v194 = vcosq.f32.pop %v192
    %v195 = vsinq.f32.pop %v192
    %vm196 = vweird.f32 %v103
    %v197 = vadd.s32 %v193, 3
    %v198 = vand.u32 %v197, 3
    %vm199 = vcmp.lt.s32.totalorder %v198, 2
    %vm200 = vcmp.eq.s32.totalorder %v198, 0
    %v201 = vxor.u32 %v195, 2147483648
    %v202 = vsel %vm200, %v194, %v201
    %vm203 = vcmp.eq.s32.totalorder %v198, 2
    %v204 = vxor.u32 %v194, 2147483648
    %v205 = vsel %vm203, %v204, %v195
    %v206 = vsel %vm199, %v202, %v205
    %v207 = vsel %vm196, nan, %v206
    %208 = vst [vmem:[#allocation2] sm:$0xff] %v207
    // Predicated region
    $region10: #{tpu_custom_call.1} parent=1 // pred_check
      _
    $region11: #{tpu_custom_call.1} parent=1 // pred_check_branch
      %210 = sbr.rel (0) target = $region13
    $region12: #{tpu_custom_call.1} parent=1 // pred_region
      %s212 = ssub.s32 128, 128
      %213 = vsyncadd [#allocation3], %s212
      %s215 = sshll.u32 [#allocation2], 4
      %s216 = int_to_ptr.vmem [resolvable:$true] %s215
      %218 = dma.vmem_to_hbm [thread:$0]  %s216, 128, %s2, [#allocation3]
    $region13: #{tpu_custom_call.1} parent=1 // pred_fallthru
      _
    // Predicated region
    $region14: #{tpu_custom_call.1} parent=1 // pred_check
      _
    $region15: #{tpu_custom_call.1} parent=1 // pred_check_branch
      %220 = sbr.rel (0) target = $region17
    $region16: #{tpu_custom_call.1} parent=1 // pred_region
      %221 = dma.done [#allocation3], 128
    $region17: #{tpu_custom_call.1} parent=1 // pred_fallthru
      _
    %222 = vsyncpa [#allocation3], 1

</llo_original>
